<compile_context>
chip_gen: v5e
topology: v5e:2x2
jax: 0.10.0
libtpu: 0.0.40
codegen_flags: <defaults>
</compile_context>

<pallas_src>
import functools

import jax
import jax.numpy as jnp
from jax.experimental import pallas as pl
from jax.experimental.pallas import tpu as pltpu


def _layernorm_c_kernel(x_ref, w_ref, b_ref, o_ref, *, eps):
    # x_ref: (tile_b, C, tile_t) block; normalize over axis=1 (channels).
    x = x_ref[...].astype(jnp.float32)
    mu = jnp.mean(x, axis=1, keepdims=True)                      # (tb, 1, tt)
    res = x - mu
    sigma = jnp.mean(res * res, axis=1, keepdims=True)           # biased variance
    rinv = jax.lax.rsqrt(sigma + eps)                            # EUP
    w = w_ref[...].astype(jnp.float32)                           # (1, C, 1), VMEM-resident
    b = b_ref[...].astype(jnp.float32)
    o_ref[...] = (res * rinv * w + b).astype(o_ref.dtype)


def _choose_tiles(B, C, T, *, block_budget_bytes):
    """Pick (tile_b, tile_t) so one f32 working block stays under the budget.

    Prefers folding the whole batch into the block (C is usually small) and
    making the time tile as large as possible (lane-dense, fewer grid steps).
    """
    max_lanes = max(block_budget_bytes // (4 * C), 128)
    if B * T <= max_lanes:
        # Whole tensor fits in a single block.
        return B, T
    if T >= max_lanes:
        # Even one batch row exceeds the budget: tile over time only.
        tile_t = max(128, (max_lanes // 128) * 128)
        return 1, tile_t
    # Full T fits; fold as many batch rows as the budget allows.
    tile_b = max(1, max_lanes // T)
    return min(tile_b, B), T


def layer_norm_c(x, weight=None, bias=None, *, eps=1e-5,
                 block_budget_bytes=4 << 20, vmem_limit_bytes=48 << 20):
    """LayerNorm over the channel dim of a (B, C, T) tensor (ActionFormer tLN)."""
    B, C, T = x.shape
    if weight is None:
        weight = jnp.ones((1, C, 1), dtype=x.dtype)
    if bias is None:
        bias = jnp.zeros((1, C, 1), dtype=x.dtype)

    tile_b, tile_t = _choose_tiles(B, C, T, block_budget_bytes=block_budget_bytes)
    grid = (pl.cdiv(B, tile_b), pl.cdiv(T, tile_t))

    kernel = functools.partial(_layernorm_c_kernel, eps=eps)

    return pl.pallas_call(
        kernel,
        out_shape=jax.ShapeDtypeStruct((B, C, T), x.dtype),
        grid_spec=pltpu.PrefetchScalarGridSpec(
            num_scalar_prefetch=0,
            grid=grid,
            in_specs=[
                pl.BlockSpec((tile_b, C, tile_t), lambda b, t: (b, 0, t)),  # x
                pl.BlockSpec((1, C, 1), lambda b, t: (0, 0, 0)),            # weight (resident)
                pl.BlockSpec((1, C, 1), lambda b, t: (0, 0, 0)),            # bias   (resident)
            ],
            out_specs=pl.BlockSpec((tile_b, C, tile_t), lambda b, t: (b, 0, t)),
        ),
        compiler_params=pltpu.CompilerParams(
            dimension_semantics=("parallel", "parallel"),
            vmem_limit_bytes=vmem_limit_bytes,
        ),
    )(x, weight, bias)


def layer_norm_c_ref(x, weight, bias, eps=1e-5):
    xf = x.astype(jnp.float32)
    mu = jnp.mean(xf, axis=1, keepdims=True)
    res = xf - mu
    sigma = jnp.mean(res * res, axis=1, keepdims=True)
    out = res / jnp.sqrt(sigma + eps)
    out = out * weight + bias
    return out.astype(x.dtype)


if __name__ == "__main__":
    key = jax.random.PRNGKey(0)
    eps = 1e-5

    # --- main check: small shapes (single big block, grid (1, 1)) ------------
    B, C, T = 2, 8, 256
    x = jax.random.normal(key, (B, C, T), dtype=jnp.float32)
    # Deterministic params matching nn.Parameter(torch.ones/zeros([1, C, 1]))
    weight = jnp.ones((1, C, 1), dtype=jnp.float32)
    bias = jnp.zeros((1, C, 1), dtype=jnp.float32)

    out = layer_norm_c(x, weight, bias, eps=eps)
    out = jax.block_until_ready(out)
    ref = layer_norm_c_ref(x, weight, bias, eps=eps)
    assert out.shape == (B, C, T)
    assert jnp.allclose(out, ref, atol=1e-5, rtol=1e-5), "mismatch vs reference"

    # --- tiled + padded-tail check: tiny VMEM budget forces multi-step grid --
    B2, C2, T2 = 2, 8, 384
    x2 = jax.random.normal(jax.random.PRNGKey(1), (B2, C2, T2), dtype=jnp.float32)
    w2 = jnp.ones((1, C2, 1), dtype=jnp.float32)
    b2 = jnp.zeros((1, C2, 1), dtype=jnp.float32)
    out2 = layer_norm_c(x2, w2, b2, eps=eps, block_budget_bytes=4 * C2 * 256)
    out2 = jax.block_until_ready(out2)
    ref2 = layer_norm_c_ref(x2, w2, b2, eps=eps)
    assert jnp.allclose(out2, ref2, atol=1e-5, rtol=1e-5), "mismatch (tiled/tail)"

    print("KERNEL_OK")
</pallas_src>

<mosaic_0001>
module attributes {stable_mosaic.version = 11 : i64} {
  func.func @_layernorm_c_kernel(%arg0: i32, %arg1: i32, %arg2: memref<2x8x256xf32, #tpu.memory_space<vmem>>, %arg3: memref<1x8x1xf32, #tpu.memory_space<vmem>>, %arg4: memref<1x8x1xf32, #tpu.memory_space<vmem>>, %arg5: memref<2x8x256xf32, #tpu.memory_space<vmem>>) attributes {dimension_semantics = [#tpu.dimension_semantics<parallel>, #tpu.dimension_semantics<parallel>], iteration_bounds = array<i64: 1, 1>, scalar_prefetch = 0 : i64, scratch_operands = 0 : i64, tpu.core_type = #tpu.core_type<tc>, window_params = [{transform_indices = @transform_0, window_bounds = array<i64: 2, 8, 256>}, {pipeline_mode = #tpu.pipeline_mode<synchronous>, transform_indices = @transform_1, window_bounds = array<i64: 1, 8, 1>}, {pipeline_mode = #tpu.pipeline_mode<synchronous>, transform_indices = @transform_2, window_bounds = array<i64: 1, 8, 1>}, {transform_indices = @transform_3, window_bounds = array<i64: 2, 8, 256>}]} {
    %c0 = arith.constant 0 : index
    %c0_0 = arith.constant 0 : index
    %c0_1 = arith.constant 0 : index
    %0 = vector.load %arg2[%c0, %c0_0, %c0_1] : memref<2x8x256xf32, #tpu.memory_space<vmem>>, vector<2x8x256xf32>
    %cst = arith.constant dense<0.000000e+00> : vector<2x256xf32>
    %1 = vector.multi_reduction <add>, %0, %cst [1] : vector<2x8x256xf32> to vector<2x256xf32>
    %2 = vector.shape_cast %1 : vector<2x256xf32> to vector<2x1x256xf32>
    %cst_2 = arith.constant 8.000000e+00 : f32
    %3 = vector.broadcast %cst_2 : f32 to vector<2x1x256xf32>
    %4 = arith.divf %2, %3 : vector<2x1x256xf32>
    %5 = vector.broadcast %4 : vector<2x1x256xf32> to vector<2x8x256xf32>
    %6 = arith.subf %0, %5 : vector<2x8x256xf32>
    %7 = arith.mulf %6, %6 : vector<2x8x256xf32>
    %cst_3 = arith.constant dense<0.000000e+00> : vector<2x256xf32>
    %8 = vector.multi_reduction <add>, %7, %cst_3 [1] : vector<2x8x256xf32> to vector<2x256xf32>
    %9 = vector.shape_cast %8 : vector<2x256xf32> to vector<2x1x256xf32>
    %cst_4 = arith.constant 8.000000e+00 : f32
    %10 = vector.broadcast %cst_4 : f32 to vector<2x1x256xf32>
    %11 = arith.divf %9, %10 : vector<2x1x256xf32>
    %cst_5 = arith.constant 9.99999974E-6 : f32
    %12 = vector.broadcast %cst_5 : f32 to vector<2x1x256xf32>
    %13 = arith.addf %11, %12 : vector<2x1x256xf32>
    %14 = math.rsqrt %13 : vector<2x1x256xf32>
    %c0_6 = arith.constant 0 : index
    %c0_7 = arith.constant 0 : index
    %c0_8 = arith.constant 0 : index
    %15 = vector.load %arg3[%c0_6, %c0_7, %c0_8] : memref<1x8x1xf32, #tpu.memory_space<vmem>>, vector<1x8x1xf32>
    %c0_9 = arith.constant 0 : index
    %c0_10 = arith.constant 0 : index
    %c0_11 = arith.constant 0 : index
    %16 = vector.load %arg4[%c0_9, %c0_10, %c0_11] : memref<1x8x1xf32, #tpu.memory_space<vmem>>, vector<1x8x1xf32>
    %17 = vector.broadcast %14 : vector<2x1x256xf32> to vector<2x8x256xf32>
    %18 = arith.mulf %6, %17 : vector<2x8x256xf32>
    %19 = vector.broadcast %15 : vector<1x8x1xf32> to vector<2x8x256xf32>
    %20 = arith.mulf %18, %19 : vector<2x8x256xf32>
    %21 = vector.broadcast %16 : vector<1x8x1xf32> to vector<2x8x256xf32>
    %22 = arith.addf %20, %21 : vector<2x8x256xf32>
    %c0_12 = arith.constant 0 : index
    %c0_13 = arith.constant 0 : index
    %c0_14 = arith.constant 0 : index
    %23 = vector.load %arg5[%c0_12, %c0_13, %c0_14] : memref<2x8x256xf32, #tpu.memory_space<vmem>>, vector<2x8x256xf32>
    tpu.vector_store %arg5[%c0_12, %c0_13, %c0_14], %22 {strides = array<i32>} : memref<2x8x256xf32, #tpu.memory_space<vmem>>, vector<2x8x256xf32>,
    return
  }
  func.func @transform_0(%arg0: i32, %arg1: i32) -> (i32, i32, i32) {
    %c0_i32 = arith.constant 0 : i32
    %c0_i32_0 = arith.constant 0 : i32
    return %arg0, %c0_i32, %arg1 : i32, i32, i32
  }
  func.func @transform_1(%arg0: i32, %arg1: i32) -> (i32, i32, i32) {
    %c0_i32 = arith.constant 0 : i32
    %c0_i32_0 = arith.constant 0 : i32
    %c0_i32_1 = arith.constant 0 : i32
    %c0_i32_2 = arith.constant 0 : i32
    return %c0_i32, %c0_i32_0, %c0_i32_1 : i32, i32, i32
  }
  func.func @transform_2(%arg0: i32, %arg1: i32) -> (i32, i32, i32) {
    %c0_i32 = arith.constant 0 : i32
    %c0_i32_0 = arith.constant 0 : i32
    %c0_i32_1 = arith.constant 0 : i32
    %c0_i32_2 = arith.constant 0 : i32
    return %c0_i32, %c0_i32_0, %c0_i32_1 : i32, i32, i32
  }
  func.func @transform_3(%arg0: i32, %arg1: i32) -> (i32, i32, i32) {
    %c0_i32 = arith.constant 0 : i32
    %c0_i32_0 = arith.constant 0 : i32
    return %arg0, %c0_i32, %arg1 : i32, i32, i32
  }
}

</mosaic_0001>

<llo_original>
// kernel: tpu_custom_call.1
$region0: #{tpu_custom_call.1}
  #allocation0 [shape = 'u32[]', space=smem, size = 0x4, offset = 0x4, fixed_abs, tag = 'smem constant byte address 0x4 - core index']
  #allocation1 [shape = 'u32[72,128]{1,0:T(1,128)}', space=vmem, size = 0x9000, scoped, tag = 'internal scratch']
  %s0 = inlined_call_operand.hbm [shape: f32[2,8,256], index: 0, kind: input, shape index: {}]
  %s1 = inlined_call_operand.vmem [shape: f32[1,8,1], index: 1, kind: input, shape index: {}]
  %s2 = inlined_call_operand.vmem [shape: f32[1,8,1], index: 2, kind: input, shape index: {}]
  %s3 = inlined_call_operand.hbm [shape: f32[2,8,256], index: 3, kind: output, shape index: {}]
  %s4 = sld [smem:[#allocation0]]
  $region26: #{tpu_custom_call.1} parent=0
    _
  %s6 = ssub.s32 1, %s4
  %s7 = scalar_select 0, %s6, %s4
  $region1: #{tpu_custom_call.1} parent=0
    #allocation2 [shape = 'u8[16384]{0}', space=vmem, size = 0x4000, scoped, tag = 'input window, operand 0, single buffered']
    #allocation3 [shape = 's32[1]{0}', space=sflag, size = 0x4, scoped, tag = 'scoped memory for tpu_custom_call.1']
    #allocation4 [shape = 's32[1]{0}', space=sflag, size = 0x4, scoped, tag = 'scoped memory for tpu_custom_call.1']
    #allocation5 [shape = 'u8[16384]{0}', space=vmem, size = 0x4000, scoped, tag = 'output window, operand 0, single buffered']
    %8 = vsyncpa [#allocation3], 0
    %9 = vsyncpa [#allocation4], 0
    // Predicated region
    $region2: #{tpu_custom_call.1} parent=1 // pred_check
      _
    $region3: #{tpu_custom_call.1} parent=1 // pred_check_branch
      %11 = sbr.rel (0) target = $region5
    $region4: #{tpu_custom_call.1} parent=1 // pred_region
      %13 = vsyncadd [#allocation3], 0
      %s14 = sshll.u32 %s0, 4
      %s15 = int_to_ptr.hbm [resolvable:$true] %s14
      %s16 = sshll.u32 [#allocation2], 4
      %s17 = int_to_ptr.vmem [resolvable:$true] %s16
      %22 = dma.hbm_to_vmem [thread:$0]  %s15, 512, %s17, [#allocation3], 256, 256, 16
    $region5: #{tpu_custom_call.1} parent=1 // pred_fallthru
      _
    // Predicated region
    $region6: #{tpu_custom_call.1} parent=1 // pred_check
      _
    $region7: #{tpu_custom_call.1} parent=1 // pred_check_branch
      %24 = sbr.rel (0) target = $region9
    $region8: #{tpu_custom_call.1} parent=1 // pred_region
      _
    $region9: #{tpu_custom_call.1} parent=1 // pred_fallthru
      _
    // Predicated region
    $region10: #{tpu_custom_call.1} parent=1 // pred_check
      _
    $region11: #{tpu_custom_call.1} parent=1 // pred_check_branch
      %26 = sbr.rel (0) target = $region13
    $region12: #{tpu_custom_call.1} parent=1 // pred_region
      _
    $region13: #{tpu_custom_call.1} parent=1 // pred_fallthru
      _
    // Predicated region
    $region14: #{tpu_custom_call.1} parent=1 // pred_check
      _
    $region15: #{tpu_custom_call.1} parent=1 // pred_check_branch
      %28 = sbr.rel (0) target = $region17
    $region16: #{tpu_custom_call.1} parent=1 // pred_region
      %30 = dma.done [#allocation3], 512
    $region17: #{tpu_custom_call.1} parent=1 // pred_fallthru
      _
    %v31 = vld [vmem:[#allocation2] sm:$0xff]
    %v32 = vld [vmem:[#allocation2 + $0x8] sm:$0xff]
    %v33 = vld [vmem:[#allocation2 + $0x10] sm:$0xff]
    %v34 = vld [vmem:[#allocation2 + $0x18] sm:$0xff]
    %v35 = vrot.slane %v31, 4
    %v36 = vadd.f32 %v31, %v35
    %v37 = vrot.slane %v36, 2
    %v38 = vadd.f32 %v36, %v37
    %v39 = vrot.slane %v38, 1
    %v40 = vadd.f32 %v38, %v39
    %v41 = vrot.slane %v32, 4
    %v42 = vadd.f32 %v32, %v41
    %v43 = vrot.slane %v42, 2
    %v44 = vadd.f32 %v42, %v43
    %v45 = vrot.slane %v44, 1
    %v46 = vadd.f32 %v44, %v45
    %v47 = vrot.slane %v33, 4
    %v48 = vadd.f32 %v33, %v47
    %v49 = vrot.slane %v48, 2
    %v50 = vadd.f32 %v48, %v49
    %v51 = vrot.slane %v50, 1
    %v52 = vadd.f32 %v50, %v51
    %v53 = vrot.slane %v34, 4
    %v54 = vadd.f32 %v34, %v53
    %v55 = vrot.slane %v54, 2
    %v56 = vadd.f32 %v54, %v55
    %v57 = vrot.slane %v56, 1
    %v58 = vadd.f32 %v56, %v57
    %v59 = vrcp.pop 8.0
    %v60 = vmul.f32 8.0, %v59
    %v61 = vsub.f32 1.0, %v60
    %v62 = vmul.f32 %v59, %v61
    %v63 = vadd.f32 %v59, %v62
    %vm64 = vweird.f32 %v59
    %v65 = vsel %vm64, %v59, %v63
    %v66 = vmul.f32 %v40, %v65
    %v67 = vmul.f32 %v46, %v65
    %v68 = vmul.f32 %v52, %v65
    %v69 = vmul.f32 %v58, %v65
    %v70 = vsub.f32 %v31, %v66
    %v71 = vsub.f32 %v32, %v67
    %v72 = vsub.f32 %v33, %v68
    %v73 = vsub.f32 %v34, %v69
    %v74 = vmul.f32 %v70, %v70
    %v75 = vmul.f32 %v71, %v71
    %v76 = vmul.f32 %v72, %v72
    %v77 = vmul.f32 %v73, %v73
    %v78 = vrot.slane %v74, 4
    %v79 = vadd.f32 %v74, %v78
    %v80 = vrot.slane %v79, 2
    %v81 = vadd.f32 %v79, %v80
    %v82 = vrot.slane %v81, 1
    %v83 = vadd.f32 %v81, %v82
    %v84 = vrot.slane %v75, 4
    %v85 = vadd.f32 %v75, %v84
    %v86 = vrot.slane %v85, 2
    %v87 = vadd.f32 %v85, %v86
    %v88 = vrot.slane %v87, 1
    %v89 = vadd.f32 %v87, %v88
    %v90 = vrot.slane %v76, 4
    %v91 = vadd.f32 %v76, %v90
    %v92 = vrot.slane %v91, 2
    %v93 = vadd.f32 %v91, %v92
    %v94 = vrot.slane %v93, 1
    %v95 = vadd.f32 %v93, %v94
    %v96 = vrot.slane %v77, 4
    %v97 = vadd.f32 %v77, %v96
    %v98 = vrot.slane %v97, 2
    %v99 = vadd.f32 %v97, %v98
    %v100 = vrot.slane %v99, 1
    %v101 = vadd.f32 %v99, %v100
    %v102 = vmul.f32 %v83, %v65
    %v103 = vmul.f32 %v89, %v65
    %v104 = vmul.f32 %v95, %v65
    %v105 = vmul.f32 %v101, %v65
    %v106 = vadd.f32 %v102, 1e-05
    %v107 = vadd.f32 %v103, 1e-05
    %v108 = vadd.f32 %v104, 1e-05
    %v109 = vadd.f32 %v105, 1e-05
    %v110 = vrsqrt.pop %v106
    %v111 = vmul.f32 %v110, %v106
    %v112 = vmul.f32 %v111, %v110
    %v113 = vmul.f32 0.5, %v112
    %v114 = vsub.f32 1.5, %v113
    %v115 = vmul.f32 %v110, %v114
    %vm116 = vweird.f32 %v106
    %vm117 = vweird.f32 %v110
    %vm118 = vmor %vm116, %vm117
    %v119 = vsel %vm118, %v110, %v115
    %v120 = vrsqrt.pop %v107
    %v121 = vmul.f32 %v120, %v107
    %v122 = vmul.f32 %v121, %v120
    %v123 = vmul.f32 0.5, %v122
    %v124 = vsub.f32 1.5, %v123
    %v125 = vmul.f32 %v120, %v124
    %vm126 = vweird.f32 %v107
    %vm127 = vweird.f32 %v120
    %vm128 = vmor %vm126, %vm127
    %v129 = vsel %vm128, %v120, %v125
    %v130 = vrsqrt.pop %v108
    %v131 = vmul.f32 %v130, %v108
    %v132 = vmul.f32 %v131, %v130
    %v133 = vmul.f32 0.5, %v132
    %v134 = vsub.f32 1.5, %v133
    %v135 = vmul.f32 %v130, %v134
    %vm136 = vweird.f32 %v108
    %vm137 = vweird.f32 %v130
    %vm138 = vmor %vm136, %vm137
    %v139 = vsel %vm138, %v130, %v135
    %v140 = vrsqrt.pop %v109
    %v141 = vmul.f32 %v140, %v109
    %v142 = vmul.f32 %v141, %v140
    %v143 = vmul.f32 0.5, %v142
    %v144 = vsub.f32 1.5, %v143
    %v145 = vmul.f32 %v140, %v144
    %vm146 = vweird.f32 %v109
    %vm147 = vweird.f32 %v140
    %vm148 = vmor %vm146, %vm147
    %v149 = vsel %vm148, %v140, %v145
    %v150 = vld [vmem:[%s1] sm:$0xff]
    %v151 = vld [vmem:[%s2] sm:$0xff]
    %v152 = vmul.f32 %v70, %v119
    %v153 = vmul.f32 %v71, %v129
    %v154 = vmul.f32 %v72, %v139
    %v155 = vmul.f32 %v73, %v149
    %157 = vset.pattern.permute.xlu0 0
    %158 = vperm.xlu0 %157, %v150
    %v159 = vpop.permute.xlu0 %158
    %v161 = vmul.f32 %v152, %v159
    %v162 = vmul.f32 %v153, %v159
    %v163 = vmul.f32 %v154, %v159
    %v164 = vmul.f32 %v155, %v159
    %166 = vset.pattern.permute.xlu0 0
    %167 = vperm.xlu0 %166, %v151
    %v168 = vpop.permute.xlu0 %167
    %v170 = vadd.f32 %v161, %v168
    %v171 = vadd.f32 %v162, %v168
    %v172 = vadd.f32 %v163, %v168
    %v173 = vadd.f32 %v164, %v168
    %174 = vst [vmem:[#allocation5] sm:$0xff] %v170
    %175 = vst [vmem:[#allocation5 + $0x8] sm:$0xff] %v171
    %176 = vst [vmem:[#allocation5 + $0x10] sm:$0xff] %v172
    %177 = vst [vmem:[#allocation5 + $0x18] sm:$0xff] %v173
    // Predicated region
    $region18: #{tpu_custom_call.1} parent=1 // pred_check
      _
    $region19: #{tpu_custom_call.1} parent=1 // pred_check_branch
      %179 = sbr.rel (0) target = $region21
    $region20: #{tpu_custom_call.1} parent=1 // pred_region
      %181 = vsyncadd [#allocation4], 0
      %s182 = sshll.u32 [#allocation5], 4
      %s183 = int_to_ptr.vmem [resolvable:$true] %s182
      %s184 = sshll.u32 %s3, 4
      %s185 = int_to_ptr.hbm [resolvable:$true] %s184
      %190 = dma.vmem_to_hbm [thread:$0]  %s183, 512, %s185, [#allocation4], 256, 256, 16
    $region21: #{tpu_custom_call.1} parent=1 // pred_fallthru
      _
    // Predicated region
    $region22: #{tpu_custom_call.1} parent=1 // pred_check
      _
    $region23: #{tpu_custom_call.1} parent=1 // pred_check_branch
      %192 = sbr.rel (0) target = $region25
    $region24: #{tpu_custom_call.1} parent=1 // pred_region
      %194 = dma.done [#allocation4], 512
    $region25: #{tpu_custom_call.1} parent=1 // pred_fallthru
      _
    %195 = vsyncpa [#allocation3], 1
    %196 = vsyncpa [#allocation4], 1

</llo_original>
